<compile_context>
chip_gen: v6e
topology: v6e:2x2x1
jax: 0.10.0
libtpu: 0.0.40
codegen_flags: <defaults>
</compile_context>

<pallas_src>
import jax
import jax.numpy as jnp
from jax.experimental import pallas as pl
from jax.experimental.pallas import tpu as pltpu

LANE = 128  # TPU vreg lane width


def _scst_loss_kernel(scalars_ref, sample_ref, logp_ref, score_ref, div_ref,
                      loss_ref):
    """Per-block (TB rows) self-critical + diversity loss.

    scalars_ref : SMEM (2,)      int32   [end_token, real_T]
    sample_ref  : VMEM (TB, Tp)  int32   sampled token ids (T padded to Tp)
    logp_ref    : VMEM (TB, Tp)  float32 log-probs of sampled tokens
    score_ref   : VMEM (1, TB)   float32 per-row CIDEr advantage ("reward")
    div_ref     : VMEM (1, TB)   float32 per-row 0.1 * relative diversity
    loss_ref    : VMEM (1, TB)   float32 per-row loss (lane-dense output)
    """
    end_tok = scalars_ref[0]
    t_real = scalars_ref[1]

    sample = sample_ref[...]                                   # (TB, Tp) int32
    tb, t_pad = sample.shape

    # ---- create_mask: 1 up to and including the first <end>; whole real row
    # if there is no <end>.  Pad columns (t >= t_real) are always masked out,
    # so T-padding never changes the numerator or the denominator.
    t_iota = jax.lax.broadcasted_iota(jnp.int32, (tb, t_pad), 1)
    is_end = sample == end_tok
    first_end = jnp.min(jnp.where(is_end, t_iota, t_pad),
                        axis=1, keepdims=True)                 # (TB, 1)
    mask = jnp.logical_and(t_iota <= first_end,
                           t_iota < t_real).astype(jnp.float32)  # (TB, Tp)

    # ---- accuracy = -reward * sum(logp * mask) / sum(mask) ----------------
    # reward is constant along T in the reference implementation, so it is
    # applied after the row reduction (no (B, T) reward stream needed).
    num = jnp.sum(logp_ref[...] * mask, axis=1, keepdims=True)  # (TB, 1)
    den = jnp.sum(mask, axis=1, keepdims=True)                  # (TB, 1) >= 1
    acc_col = -num * pl.reciprocal(den, approx=False)           # (TB, 1)

    # ---- per-row loss = accuracy * reward + diversity (lane-dense store) ---
    acc_row = jnp.transpose(acc_col, (1, 0))                    # (1, TB)
    loss_ref[...] = acc_row * score_ref[...] + div_ref[...]


def _round_up(x, m):
    return ((x + m - 1) // m) * m


def _pick_row_tile(batch, t_pad, vmem_budget_bytes=12 << 20):
    """Largest row tile that divides `batch` and keeps the double-buffered
    (sample, logp) input streams inside a VMEM budget safe even for v5e's
    16 MiB scoped default (and well under v7x's 64 MiB physical VMEM)."""
    bytes_per_row = 2 * 2 * t_pad * 4          # 2 streams x 2 buffers x 4B
    max_rows = max(1, vmem_budget_bytes // bytes_per_row)
    if batch <= max_rows:
        return batch
    # A tile smaller than the full batch must be lane-aligned (multiple of
    # 128) so the (1, TB) blocks of the lane-dense score/diversity/loss
    # arrays satisfy the TPU tiling rule.
    cands = [d for d in range(LANE, max_rows + 1, LANE) if batch % d == 0]
    return cands[-1] if cands else batch


def self_critical_loss(sample, sample_log_probs, scores, diversity, end_token,
                       return_advantage=False):
    """JAX/Pallas equivalent of SelfCriticalWithRelativeDiversityLoss.forward.

    sample:           (B, T) int32    sampled token ids
    sample_log_probs: (B, T) float32  log-probs of the sampled tokens
    scores:           (B,)   float32  CIDEr(sample) - CIDEr(greedy) per row
                                      (the value the reference repeats over T)
    diversity:        (B,)   float32  0.1 * relative diversity per row
    end_token:        int             vocab('<end>')
    """
    B, T = sample.shape

    # Pad T to the 128-lane width so input loads are unmasked / lane-dense.
    Tp = _round_up(T, LANE)
    if Tp != T:
        sample = jnp.pad(sample, ((0, 0), (0, Tp - T)))
        sample_log_probs = jnp.pad(sample_log_probs, ((0, 0), (0, Tp - T)))

    TB = _pick_row_tile(B, Tp)
    grid = (B // TB,)

    scalars = jnp.array([end_token, T], dtype=jnp.int32)
    score_row = scores.reshape(1, B).astype(jnp.float32)
    div_row = diversity.reshape(1, B).astype(jnp.float32)

    per_row_loss = pl.pallas_call(
        _scst_loss_kernel,
        out_shape=jax.ShapeDtypeStruct((1, B), jnp.float32),
        grid=grid,
        in_specs=[
            pl.BlockSpec(memory_space=pltpu.MemorySpace.SMEM),   # scalars
            pl.BlockSpec((TB, Tp), lambda i: (i, 0)),            # sample
            pl.BlockSpec((TB, Tp), lambda i: (i, 0)),            # log probs
            pl.BlockSpec((1, TB), lambda i: (0, i)),             # reward row
            pl.BlockSpec((1, TB), lambda i: (0, i)),             # diversity row
        ],
        out_specs=pl.BlockSpec((1, TB), lambda i: (0, i)),
        compiler_params=pltpu.CompilerParams(
            dimension_semantics=("parallel",)),
    )(scalars, sample.astype(jnp.int32),
      sample_log_probs.astype(jnp.float32), score_row, div_row)

    loss = jnp.mean(per_row_loss)
    advantage = jnp.mean(scores)
    return (loss, advantage) if return_advantage else loss


def _reference(sample, logp, scores, diversity, end_token):
    """Pure-JAX reference matching the PyTorch semantics (sanity check)."""
    B, T = sample.shape
    t = jnp.arange(T)[None, :]
    is_end = sample == end_token
    first = jnp.min(jnp.where(is_end, t, T), axis=1, keepdims=True)
    mask = (t < first + 1).astype(jnp.float32)
    reward = scores[:, None]                       # constant along T
    acc = -(logp * reward * mask).sum(axis=1) / mask.sum(axis=1)
    return jnp.mean(acc + diversity)


if __name__ == "__main__":
    # Small, deterministic example: batch=8, seq=16, vocab=32
    B, T, V = 8, 16, 32
    END_TOKEN = 2  # synthetic vocab('<end>')

    key = jax.random.PRNGKey(0)
    k1, k2, k3, k4 = jax.random.split(key, 4)

    # Sampled token ids; some rows contain an <end> token, some do not.
    sample = jax.random.randint(k1, (B, T), minval=3, maxval=V, dtype=jnp.int32)
    end_positions = jnp.array([3, 7, 15, 5, 11, 2, 9, 6], dtype=jnp.int32)
    has_end = jnp.array([1, 1, 0, 1, 1, 1, 0, 1], dtype=jnp.int32)
    sample = jnp.where(
        (jnp.arange(T)[None, :] == end_positions[:, None])
        & (has_end[:, None] == 1),
        END_TOKEN, sample)

    # Log-probs of the sampled tokens (negative values).
    sample_log_probs = -jnp.abs(jax.random.normal(k2, (B, T), dtype=jnp.float32))

    # TODO(synk): CIDEr-D scoring of decoded captions is string/host-side; the
    # per-sentence advantage scores are synthesized deterministically instead.
    scores = jax.random.normal(k3, (B,), dtype=jnp.float32)

    # TODO(synk): relative_diversity does n-gram set arithmetic on strings; its
    # (already 0.1-scaled) numeric output is synthesized deterministically.
    diversity = 0.1 * jnp.abs(jax.random.normal(k4, (B,), dtype=jnp.float32))

    loss, advantage = self_critical_loss(
        sample, sample_log_probs, scores, diversity, END_TOKEN,
        return_advantage=True)
    loss = jax.block_until_ready(loss)
    advantage = jax.block_until_ready(advantage)

    # Sanity check against pure-JAX reference.
    ref = _reference(sample, sample_log_probs, scores, diversity, END_TOKEN)
    assert jnp.allclose(loss, ref, rtol=1e-5, atol=1e-5), (loss, ref)

    print("KERNEL_OK")
</pallas_src>

<mosaic_0001>
module attributes {stable_mosaic.version = 11 : i64} {
  func.func @_scst_loss_kernel(%arg0: i32, %arg1: memref<2xi32, #tpu.memory_space<smem>>, %arg2: memref<8x128xi32, #tpu.memory_space<vmem>>, %arg3: memref<8x128xf32, #tpu.memory_space<vmem>>, %arg4: memref<1x8xf32, #tpu.memory_space<vmem>>, %arg5: memref<1x8xf32, #tpu.memory_space<vmem>>, %arg6: memref<1x8xf32, #tpu.memory_space<vmem>>) attributes {dimension_semantics = [#tpu.dimension_semantics<parallel>], iteration_bounds = array<i64: 1>, scalar_prefetch = 0 : i64, scratch_operands = 0 : i64, tpu.core_type = #tpu.core_type<tc>, window_params = [{transform_indices = @transform_0, window_bounds = array<i64: 2>}, {transform_indices = @transform_1, window_bounds = array<i64: 8, 128>}, {transform_indices = @transform_2, window_bounds = array<i64: 8, 128>}, {transform_indices = @transform_3, window_bounds = array<i64: 1, 8>}, {transform_indices = @transform_4, window_bounds = array<i64: 1, 8>}, {transform_indices = @transform_5, window_bounds = array<i64: 1, 8>}]} {
    %c0 = arith.constant 0 : index
    %0 = memref.load %arg1[%c0] : memref<2xi32, #tpu.memory_space<smem>>
    %c1 = arith.constant 1 : index
    %1 = memref.load %arg1[%c1] : memref<2xi32, #tpu.memory_space<smem>>
    %c0_0 = arith.constant 0 : index
    %c0_1 = arith.constant 0 : index
    %2 = vector.load %arg2[%c0_0, %c0_1] : memref<8x128xi32, #tpu.memory_space<vmem>>, vector<8x128xi32>
    %3 = tpu.iota {dimensions = array<i32: 1>} : vector<8x128xi32>
    %4 = vector.broadcast %0 : i32 to vector<8x128xi32>
    %5 = arith.cmpi eq, %2, %4 : vector<8x128xi32>
    %c128_i32 = arith.constant 128 : i32
    %6 = vector.broadcast %c128_i32 : i32 to vector<8x128xi32>
    %7 = arith.select %5, %3, %6 : vector<8x128xi1>, vector<8x128xi32>
    %cst = arith.constant dense<2147483647> : vector<8xi32>
    %8 = vector.multi_reduction <minsi>, %7, %cst [1] : vector<8x128xi32> to vector<8xi32>
    %9 = vector.shape_cast %8 : vector<8xi32> to vector<8x1xi32>
    %10 = vector.broadcast %9 : vector<8x1xi32> to vector<8x128xi32>
    %11 = arith.cmpi sle, %3, %10 : vector<8x128xi32>
    %12 = vector.broadcast %1 : i32 to vector<8x128xi32>
    %13 = arith.cmpi slt, %3, %12 : vector<8x128xi32>
    %14 = arith.andi %11, %13 : vector<8x128xi1>
    %15 = arith.extui %14 : vector<8x128xi1> to vector<8x128xi32>
    %16 = arith.sitofp %15 : vector<8x128xi32> to vector<8x128xf32>
    %c0_2 = arith.constant 0 : index
    %c0_3 = arith.constant 0 : index
    %17 = vector.load %arg3[%c0_2, %c0_3] : memref<8x128xf32, #tpu.memory_space<vmem>>, vector<8x128xf32>
    %18 = arith.mulf %17, %16 : vector<8x128xf32>
    %cst_4 = arith.constant dense<0.000000e+00> : vector<8xf32>
    %19 = vector.multi_reduction <add>, %18, %cst_4 [1] : vector<8x128xf32> to vector<8xf32>
    %20 = vector.shape_cast %19 : vector<8xf32> to vector<8x1xf32>
    %cst_5 = arith.constant dense<0.000000e+00> : vector<8xf32>
    %21 = vector.multi_reduction <add>, %16, %cst_5 [1] : vector<8x128xf32> to vector<8xf32>
    %22 = vector.shape_cast %21 : vector<8xf32> to vector<8x1xf32>
    %cst_6 = arith.constant 0.000000e+00 : f32
    %23 = vector.broadcast %cst_6 : f32 to vector<8x1xf32>
    %24 = arith.subf %23, %20 : vector<8x1xf32>
    %25 = tpu.reciprocal %22 : vector<8x1xf32> -> vector<8x1xf32>
    %26 = arith.mulf %24, %25 : vector<8x1xf32>
    %27 = tpu.transpose %26, [1, 0] : vector<8x1xf32> -> vector<1x8xf32>
    %c0_7 = arith.constant 0 : index
    %c0_8 = arith.constant 0 : index
    %28 = vector.load %arg4[%c0_7, %c0_8] : memref<1x8xf32, #tpu.memory_space<vmem>>, vector<1x8xf32>
    %29 = arith.mulf %27, %28 : vector<1x8xf32>
    %c0_9 = arith.constant 0 : index
    %c0_10 = arith.constant 0 : index
    %30 = vector.load %arg5[%c0_9, %c0_10] : memref<1x8xf32, #tpu.memory_space<vmem>>, vector<1x8xf32>
    %31 = arith.addf %29, %30 : vector<1x8xf32>
    %c0_11 = arith.constant 0 : index
    %c0_12 = arith.constant 0 : index
    %32 = vector.load %arg6[%c0_11, %c0_12] : memref<1x8xf32, #tpu.memory_space<vmem>>, vector<1x8xf32>
    tpu.vector_store %arg6[%c0_11, %c0_12], %31 {strides = array<i32>} : memref<1x8xf32, #tpu.memory_space<vmem>>, vector<1x8xf32>,
    return
  }
  func.func @transform_0(%arg0: i32) -> i32 {
    %c0_i32 = arith.constant 0 : i32
    %c0_i32_0 = arith.constant 0 : i32
    return %c0_i32 : i32
  }
  func.func @transform_1(%arg0: i32) -> (i32, i32) {
    %c0_i32 = arith.constant 0 : i32
    %c0_i32_0 = arith.constant 0 : i32
    return %arg0, %c0_i32 : i32, i32
  }
  func.func @transform_2(%arg0: i32) -> (i32, i32) {
    %c0_i32 = arith.constant 0 : i32
    %c0_i32_0 = arith.constant 0 : i32
    return %arg0, %c0_i32 : i32, i32
  }
  func.func @transform_3(%arg0: i32) -> (i32, i32) {
    %c0_i32 = arith.constant 0 : i32
    %c0_i32_0 = arith.constant 0 : i32
    return %c0_i32, %arg0 : i32, i32
  }
  func.func @transform_4(%arg0: i32) -> (i32, i32) {
    %c0_i32 = arith.constant 0 : i32
    %c0_i32_0 = arith.constant 0 : i32
    return %c0_i32, %arg0 : i32, i32
  }
  func.func @transform_5(%arg0: i32) -> (i32, i32) {
    %c0_i32 = arith.constant 0 : i32
    %c0_i32_0 = arith.constant 0 : i32
    return %c0_i32, %arg0 : i32, i32
  }
}

</mosaic_0001>

<llo_original>
// kernel: tpu_custom_call.1
$region0: #{tpu_custom_call.1}
  #allocation0 [shape = 'u32[]', space=smem, size = 0x4, offset = 0x4, fixed_abs, tag = 'smem constant byte address 0x4 - core index']
  #allocation1 [shape = 'u32[144,128]{1,0:T(1,128)}', space=vmem, size = 0x12000, scoped, tag = 'internal scratch']
  %s0 = inlined_call_operand.hbm [shape: s32[2], index: 0, kind: input, shape index: {}]
  %s1 = inlined_call_operand.hbm [shape: s32[8,128], index: 1, kind: input, shape index: {}]
  %s2 = inlined_call_operand.hbm [shape: f32[8,128], index: 2, kind: input, shape index: {}]
  %s3 = inlined_call_operand.vmem [shape: f32[1,8], index: 3, kind: input, shape index: {}]
  %s4 = inlined_call_operand.vmem [shape: f32[1,8], index: 4, kind: input, shape index: {}]
  %s5 = inlined_call_operand.hbm [shape: f32[1,8], index: 5, kind: output, shape index: {}]
  %s6 = sld [smem:[#allocation0]]
  $region42: #{tpu_custom_call.1} parent=0
    _
  %s8 = ssub.s32 1, %s6
  %s9 = scalar_select 0, %s8, %s6
  $region1: #{tpu_custom_call.1} parent=0
    #allocation2 [shape = 'u8[512]{0}', space=smem, size = 0x200, scoped, tag = 'input window, operand 0, single buffered']
    #allocation3 [shape = 's32[1]{0}', space=sflag, size = 0x4, scoped, tag = 'scoped memory for tpu_custom_call.1']
    #allocation4 [shape = 's32[1]{0}', space=sflag, size = 0x4, scoped, tag = 'scoped memory for tpu_custom_call.1']
    #allocation5 [shape = 's32[1]{0}', space=sflag, size = 0x4, scoped, tag = 'scoped memory for tpu_custom_call.1']
    #allocation6 [shape = 'u8[4096]{0}', space=vmem, size = 0x1000, scoped, tag = 'input window, operand 1, single buffered']
    #allocation7 [shape = 'u8[4096]{0}', space=vmem, size = 0x1000, scoped, tag = 'input window, operand 2, single buffered']
    #allocation8 [shape = 's32[1]{0}', space=sflag, size = 0x4, scoped, tag = 'scoped memory for tpu_custom_call.1']
    #allocation9 [shape = 'u8[512]{0}', space=vmem, size = 0x400, scoped, tag = 'output window, operand 0, single buffered']
    %10 = vsyncpa [#allocation5], 0
    %11 = vsyncpa [#allocation3], 0
    %12 = vsyncpa [#allocation8], 0
    %13 = vsyncpa [#allocation4], 0
    // Predicated region
    $region2: #{tpu_custom_call.1} parent=1 // pred_check
      _
    $region3: #{tpu_custom_call.1} parent=1 // pred_check_branch
      %15 = sbr.rel (0) target = $region5
    $region4: #{tpu_custom_call.1} parent=1 // pred_region
      %s17 = ssub.s32 16, 16
      %18 = vsyncadd [#allocation5], %s17
      %21 = dma.hbm_to_smem %s0, 16, [#allocation2], [#allocation5]
    $region5: #{tpu_custom_call.1} parent=1 // pred_fallthru
      _
    // Predicated region
    $region6: #{tpu_custom_call.1} parent=1 // pred_check
      _
    $region7: #{tpu_custom_call.1} parent=1 // pred_check_branch
      %23 = sbr.rel (0) target = $region9
    $region8: #{tpu_custom_call.1} parent=1 // pred_region
      %s25 = ssub.s32 128, 128
      %26 = vsyncadd [#allocation3], %s25
      %s28 = sshll.u32 [#allocation6], 4
      %s29 = int_to_ptr.vmem [resolvable:$true] %s28
      %31 = dma.hbm_to_vmem [thread:$0]  %s1, 128, %s29, [#allocation3]
    $region9: #{tpu_custom_call.1} parent=1 // pred_fallthru
      _
    // Predicated region
    $region10: #{tpu_custom_call.1} parent=1 // pred_check
      _
    $region11: #{tpu_custom_call.1} parent=1 // pred_check_branch
      %33 = sbr.rel (0) target = $region13
    $region12: #{tpu_custom_call.1} parent=1 // pred_region
      %s35 = ssub.s32 128, 128
      %36 = vsyncadd [#allocation8], %s35
      %s38 = sshll.u32 [#allocation7], 4
      %s39 = int_to_ptr.vmem [resolvable:$true] %s38
      %41 = dma.hbm_to_vmem [thread:$0]  %s2, 128, %s39, [#allocation8]
    $region13: #{tpu_custom_call.1} parent=1 // pred_fallthru
      _
    // Predicated region
    $region14: #{tpu_custom_call.1} parent=1 // pred_check
      _
    $region15: #{tpu_custom_call.1} parent=1 // pred_check_branch
      %43 = sbr.rel (0) target = $region17
    $region16: #{tpu_custom_call.1} parent=1 // pred_region
      _
    $region17: #{tpu_custom_call.1} parent=1 // pred_fallthru
      _
    // Predicated region
    $region18: #{tpu_custom_call.1} parent=1 // pred_check
      _
    $region19: #{tpu_custom_call.1} parent=1 // pred_check_branch
      %45 = sbr.rel (0) target = $region21
    $region20: #{tpu_custom_call.1} parent=1 // pred_region
      _
    $region21: #{tpu_custom_call.1} parent=1 // pred_fallthru
      _
    // Predicated region
    $region22: #{tpu_custom_call.1} parent=1 // pred_check
      _
    $region23: #{tpu_custom_call.1} parent=1 // pred_check_branch
      %47 = sbr.rel (0) target = $region25
    $region24: #{tpu_custom_call.1} parent=1 // pred_region
      %48 = dma.done [#allocation5], 16
    $region25: #{tpu_custom_call.1} parent=1 // pred_fallthru
      _
    // Predicated region
    $region26: #{tpu_custom_call.1} parent=1 // pred_check
      _
    $region27: #{tpu_custom_call.1} parent=1 // pred_check_branch
      %50 = sbr.rel (0) target = $region29
    $region28: #{tpu_custom_call.1} parent=1 // pred_region
      %51 = dma.done [#allocation3], 128
    $region29: #{tpu_custom_call.1} parent=1 // pred_fallthru
      _
    // Predicated region
    $region30: #{tpu_custom_call.1} parent=1 // pred_check
      _
    $region31: #{tpu_custom_call.1} parent=1 // pred_check_branch
      %53 = sbr.rel (0) target = $region33
    $region32: #{tpu_custom_call.1} parent=1 // pred_region
      %54 = dma.done [#allocation8], 128
    $region33: #{tpu_custom_call.1} parent=1 // pred_fallthru
      _
    %55 = sfence
    %s56 = sld [smem:[#allocation2]]
    %s57 = sld [smem:[#allocation2 + $0x1]]
    %v58 = vld [vmem:[#allocation6] sm:$0xff]
    %v59 = vlaneseq
    %v60 = vand.u32 %v59, 127
    %v61 = vstv %s56
    %vm62 = vcmp.eq.s32.totalorder %v58, %v61
    %v63 = vsel %vm62, %v60, 128
    %v64 = vand.u32 %v63, 65535
    %v65 = vshra.s32 %v63, 16
    %v66 = vcvt.s32.f32 %v64
    %v67 = vcvt.s32.f32 %v65
    %68 = vmin.xlane.f32.xlu0 %v67
    %v69 = vpop.xlane.xlu0 %68
    %vm70 = vcmp.eq.f32.partialorder %v67, %v69
    %v71 = vsel %vm70, %v66, inf
    %72 = vmin.xlane.f32.xlu0 %v71
    %v73 = vpop.xlane.xlu0 %72
    %v74 = vcvt.f32.s32 %v73
    %v75 = vcvt.f32.s32 %v69
    %v76 = vshll.u32 %v75, 16
    %v77 = vadd.s32 %v76, %v74
    %vm78 = vcmp.le.s32.totalorder %v60, %v77
    %v79 = vstv %s57
    %vm80 = vcmp.lt.s32.totalorder %v60, %v79
    %vm81 = vmand %vm78, %vm80
    %v82 = vsel %vm81, 1, 0
    %v83 = vcvt.s32.f32 %v82
    %v84 = vld [vmem:[#allocation7] sm:$0xff]
    %v85 = vmul.f32 %v84, %v83
    %86 = vadd.xlane.f32.xlu0 %v85
    %v87 = vpop.xlane.xlu0 %86
    %88 = vadd.xlane.f32.xlu0 %v83
    %v89 = vpop.xlane.xlu0 %88
    %v90 = vsub.f32 0.0, %v87
    %v91 = vrcp.pop %v89
    %v92 = vmul.f32 %v90, %v91
    %93 = vxpose.xlu0.b32.start [1/16] %v92, 128
    %94 = vxpose.xlu0.b32.cont [2/16] 0.0, 128
    %95 = vxpose.xlu0.b32.cont [3/16] 0.0, 128
    %96 = vxpose.xlu0.b32.cont [4/16] 0.0, 128
    %97 = vxpose.xlu0.b32.cont [5/16] 0.0, 128
    %98 = vxpose.xlu0.b32.cont [6/16] 0.0, 128
    %99 = vxpose.xlu0.b32.cont [7/16] 0.0, 128
    %100 = vxpose.xlu0.b32.cont [8/16] 0.0, 128
    %101 = vxpose.xlu0.b32.cont [9/16] 0.0, 128
    %102 = vxpose.xlu0.b32.cont [10/16] 0.0, 128
    %103 = vxpose.xlu0.b32.cont [11/16] 0.0, 128
    %104 = vxpose.xlu0.b32.cont [12/16] 0.0, 128
    %105 = vxpose.xlu0.b32.cont [13/16] 0.0, 128
    %106 = vxpose.xlu0.b32.cont [14/16] 0.0, 128
    %107 = vxpose.xlu0.b32.cont [15/16] 0.0, 128
    %108 = vxpose.xlu0.b32.end [16/16] 0.0, 128
    %v109 = vpop.trf.xlu0
    %v110 = vpop.trf.xlu0
    %v111 = vpop.trf.xlu0
    %v112 = vpop.trf.xlu0
    %v113 = vpop.trf.xlu0
    %v114 = vpop.trf.xlu0
    %v115 = vpop.trf.xlu0
    %v116 = vpop.trf.xlu0
    %v117 = vpop.trf.xlu0
    %v118 = vpop.trf.xlu0
    %v119 = vpop.trf.xlu0
    %v120 = vpop.trf.xlu0
    %v121 = vpop.trf.xlu0
    %v122 = vpop.trf.xlu0
    %v123 = vpop.trf.xlu0
    %v124 = vpop.trf.xlu0
    %v125 = vld [vmem:[%s3] sm:$0x1]
    %v126 = vmul.f32 %v109, %v125
    %v127 = vld [vmem:[%s4] sm:$0x1]
    %v128 = vadd.f32 %v126, %v127
    %vm129 = vcmask 57344
    %130 = vst.msk [vmem:[#allocation9] sm:$0x1] %vm129, %v128
    // Predicated region
    $region34: #{tpu_custom_call.1} parent=1 // pred_check
      _
    $region35: #{tpu_custom_call.1} parent=1 // pred_check_branch
      %132 = sbr.rel (0) target = $region37
    $region36: #{tpu_custom_call.1} parent=1 // pred_region
      %s134 = ssub.s32 16, 16
      %135 = vsyncadd [#allocation4], %s134
      %s137 = sshll.u32 [#allocation9], 4
      %s138 = int_to_ptr.vmem [resolvable:$true] %s137
      %140 = dma.vmem_to_hbm [thread:$0]  %s138, 16, %s5, [#allocation4]
    $region37: #{tpu_custom_call.1} parent=1 // pred_fallthru
      _
    // Predicated region
    $region38: #{tpu_custom_call.1} parent=1 // pred_check
      _
    $region39: #{tpu_custom_call.1} parent=1 // pred_check_branch
      %142 = sbr.rel (0) target = $region41
    $region40: #{tpu_custom_call.1} parent=1 // pred_region
      %143 = dma.done [#allocation4], 16
    $region41: #{tpu_custom_call.1} parent=1 // pred_fallthru
      _
    %144 = vsyncpa [#allocation3], 1
    %145 = vsyncpa [#allocation8], 1
    %146 = vsyncpa [#allocation4], 1
    %147 = vsyncpa [#allocation5], 1

</llo_original>
